<compile_context>
chip_gen: v7x
topology: tpu7x:2x2x1
jax: 0.10.0
libtpu: 0.0.40
codegen_flags: <defaults>
</compile_context>

<pallas_src>
import jax
import jax.numpy as jnp
from jax.experimental import pallas as pl
from jax.experimental.pallas import tpu as pltpu


D_NUM = 10
D_EMB = 16
D_IN = D_NUM + 2 * D_EMB   # 42
D_HID = 128
D_OUT = 384
LN_EPS = 1e-5
NORM_EPS = 1e-12

TB_MAX = 2048   # batch-tile upper bound (sweepable); ~8 MiB double-buffered f32 in+out


def student_tower_kernel(h_ref, g_ref, beta_ref, w2_ref, b2_ref, o_ref):
    # h_ref already holds  concat(num, emb_code[code], emb_prof[prof]) @ W1 + b1
    # (pre-folded in the wrapper), so the kernel starts at the LayerNorm.
    h = h_ref[...]

    # --- LayerNorm(128), eps=1e-5, affine (nn.LayerNorm default), two-pass variance ---
    mu = jnp.mean(h, axis=-1, keepdims=True)
    d = h - mu
    var = jnp.mean(d * d, axis=-1, keepdims=True)
    hn = d * jax.lax.rsqrt(var + LN_EPS)
    hn = hn * g_ref[...] + beta_ref[...]

    # --- GELU: tanh approximation (routes through EUP instead of a long VALU erf polynomial).
    #     PyTorch nn.GELU() is exact erf; deviation is <~3e-3 pre-matmul and negligible after
    #     the L2-normalize (validated against the exact-erf reference below). ---
    a = jax.nn.gelu(hn, approximate=True)

    # --- Dropout(p=0.3): identity in eval / inference mode ---
    # TODO(synk): training-mode dropout (RNG mask) intentionally not implemented.

    # --- Linear(128 -> 384): bf16 MXU inputs, f32 accumulation ---
    y = jnp.dot(a.astype(jnp.bfloat16), w2_ref[...],
                preferred_element_type=jnp.float32) + b2_ref[...]

    # --- F.normalize(dim=-1): y / max(||y||, eps)  ==  y * rsqrt(max(sum(y^2), eps^2)) ---
    sumsq = jnp.sum(y * y, axis=-1, keepdims=True)
    inv = jax.lax.rsqrt(jnp.maximum(sumsq, NORM_EPS * NORM_EPS))
    o_ref[...] = y * inv


def _pick_tiling(batch):
    """Return (batch tile, sublane-padded batch).

    - tile is a multiple of 8 sublanes and capped at TB_MAX,
    - for batch >= 16 the tile is capped at ~batch/2 so the grid has >= 2 steps
      (lets ("parallel",) shard across the 2 TensorCores on v7x; harmless on v5e/v6e).
    """
    b8 = ((batch + 7) // 8) * 8
    tb = min(TB_MAX, b8)
    if b8 >= 16:
        half = ((b8 // 2 + 7) // 8) * 8
        tb = min(tb, half)
    return tb, b8


@jax.jit
def student_tower_forward(num, code, prof, params):
    num = num.astype(jnp.float32)
    B = num.shape[0]
    TB, B8 = _pick_tiling(B)

    # Fold the whole first Linear (concat + K=42 matmul + bias) into one [B,128] stream.
    # Mathematically identical to concat([num, emb_code[code], emb_prof[prof]]) @ W1 + b1.
    w1 = params["w1"]                                           # [42, 128] stored [in, out]
    t_code = params["emb_code"] @ w1[D_NUM:D_NUM + D_EMB]       # [n_code, 128]
    t_prof = params["emb_prof"] @ w1[D_NUM + D_EMB:D_IN]        # [n_prof, 128]
    hsum = num @ w1[:D_NUM] + t_code[code] + t_prof[prof] + params["b1"]   # [B, 128]

    # Pad only to a multiple of 8 sublanes (tiny); partial last tile is handled by the
    # pipeline via pl.cdiv — no full-array padding copy to a tile multiple.
    if B8 != B:
        hsum = jnp.pad(hsum, ((0, B8 - B), (0, 0)))

    w2_bf16 = params["w2"].astype(jnp.bfloat16)                 # [128, 384] bf16 for the MXU

    grid = (pl.cdiv(B8, TB),)
    cost = pl.CostEstimate(
        flops=2 * B8 * D_HID * D_OUT,
        transcendentals=B8 * D_HID,
        bytes_accessed=4 * B8 * (D_HID + D_OUT)
        + 2 * D_HID * D_OUT + 4 * (2 * D_HID + D_OUT),
    )

    out = pl.pallas_call(
        student_tower_kernel,
        out_shape=jax.ShapeDtypeStruct((B8, D_OUT), jnp.float32),
        grid_spec=pltpu.PrefetchScalarGridSpec(
            num_scalar_prefetch=0,
            grid=grid,
            in_specs=[
                # Single batch-tiled activation stream (auto double-buffered HBM<->VMEM).
                pl.BlockSpec((TB, D_HID), lambda i: (i, 0)),
                # LN params / second-layer weights & bias: same block every step -> VMEM-resident.
                pl.BlockSpec((1, D_HID), lambda i: (0, 0)),
                pl.BlockSpec((1, D_HID), lambda i: (0, 0)),
                pl.BlockSpec((D_HID, D_OUT), lambda i: (0, 0)),
                pl.BlockSpec((1, D_OUT), lambda i: (0, 0)),
            ],
            out_specs=pl.BlockSpec((TB, D_OUT), lambda i: (i, 0)),
        ),
        compiler_params=pltpu.CompilerParams(
            dimension_semantics=("parallel",),
            vmem_limit_bytes=32 * 1024 * 1024,
        ),
        cost_estimate=cost,
    )(hsum, params["ln_gamma"], params["ln_beta"], w2_bf16, params["b2"])

    return out[:B]


def init_params(key, n_code, n_prof):
    ks = jax.random.split(key, 6)
    # Deterministic synthetic initialization (shapes from the module __init__).
    return {
        "emb_code": jax.random.normal(ks[0], (n_code, D_EMB), jnp.float32),
        "emb_prof": jax.random.normal(ks[1], (n_prof, D_EMB), jnp.float32),
        # Linear weights stored as [in, out] so the math is x @ W.
        "w1": jax.random.normal(ks[2], (D_IN, D_HID), jnp.float32) * 0.05,
        "b1": jax.random.normal(ks[3], (1, D_HID), jnp.float32) * 0.01,
        "ln_gamma": jnp.ones((1, D_HID), jnp.float32),
        "ln_beta": jnp.zeros((1, D_HID), jnp.float32),
        "w2": jax.random.normal(ks[4], (D_HID, D_OUT), jnp.float32) * 0.05,
        "b2": jax.random.normal(ks[5], (1, D_OUT), jnp.float32) * 0.01,
    }


def _reference_forward(num, code, prof, params):
    # Pure-JAX reference with the original un-folded f32 math (exact-erf GELU, as in PyTorch).
    x = jnp.concatenate([num, params["emb_code"][code], params["emb_prof"][prof]], axis=-1)
    h = x @ params["w1"] + params["b1"]
    mu = jnp.mean(h, -1, keepdims=True)
    var = jnp.mean((h - mu) ** 2, -1, keepdims=True)
    hn = (h - mu) / jnp.sqrt(var + LN_EPS) * params["ln_gamma"] + params["ln_beta"]
    a = jax.nn.gelu(hn, approximate=False)
    y = a @ params["w2"] + params["b2"]
    nrm = jnp.linalg.norm(y, axis=-1, keepdims=True)
    return y / jnp.maximum(nrm, NORM_EPS)


if __name__ == "__main__":
    key = jax.random.PRNGKey(0)
    k_par, k_num, k_code, k_prof = jax.random.split(key, 4)

    n_code, n_prof = 32, 16
    params = init_params(k_par, n_code, n_prof)

    ok = True
    for B in (8, 20):   # 20 exercises the multi-tile grid + partial last block path
        num = jax.random.normal(k_num, (B, D_NUM), jnp.float32)
        code = jax.random.randint(k_code, (B,), 0, n_code, jnp.int32)
        prof = jax.random.randint(k_prof, (B,), 0, n_prof, jnp.int32)

        out = jax.block_until_ready(student_tower_forward(num, code, prof, params))

        assert out.shape == (B, D_OUT)
        # Rows are L2-normalized.
        norms = jnp.linalg.norm(out, axis=-1)
        ok &= bool(jnp.all(jnp.abs(norms - 1.0) < 1e-3))
        # Matches the un-folded f32 / exact-erf reference (bf16 matmul + tanh-GELU ~1e-3 abs error).
        ref = _reference_forward(num, code, prof, params)
        ok &= bool(jnp.max(jnp.abs(out - ref)) < 2e-2)

    assert ok
    print("KERNEL_OK")
</pallas_src>

<mosaic_0001>
module attributes {stable_mosaic.version = 11 : i64} {
  func.func @student_tower_kernel(%arg0: i32, %arg1: memref<8x128xf32, #tpu.memory_space<vmem>>, %arg2: memref<1x128xf32, #tpu.memory_space<vmem>>, %arg3: memref<1x128xf32, #tpu.memory_space<vmem>>, %arg4: memref<128x384xbf16, #tpu.memory_space<vmem>>, %arg5: memref<1x384xf32, #tpu.memory_space<vmem>>, %arg6: memref<8x384xf32, #tpu.memory_space<vmem>>) attributes {dimension_semantics = [#tpu.dimension_semantics<parallel>], iteration_bounds = array<i64: 1>, scalar_prefetch = 0 : i64, scratch_operands = 0 : i64, tpu.core_type = #tpu.core_type<tc>, window_params = [{transform_indices = @transform_0, window_bounds = array<i64: 8, 128>}, {pipeline_mode = #tpu.pipeline_mode<synchronous>, transform_indices = @transform_1, window_bounds = array<i64: 1, 128>}, {pipeline_mode = #tpu.pipeline_mode<synchronous>, transform_indices = @transform_2, window_bounds = array<i64: 1, 128>}, {pipeline_mode = #tpu.pipeline_mode<synchronous>, transform_indices = @transform_3, window_bounds = array<i64: 128, 384>}, {pipeline_mode = #tpu.pipeline_mode<synchronous>, transform_indices = @transform_4, window_bounds = array<i64: 1, 384>}, {transform_indices = @transform_5, window_bounds = array<i64: 8, 384>}]} {
    %c0 = arith.constant 0 : index
    %c0_0 = arith.constant 0 : index
    %0 = vector.load %arg1[%c0, %c0_0] : memref<8x128xf32, #tpu.memory_space<vmem>>, vector<8x128xf32>
    %cst = arith.constant dense<0.000000e+00> : vector<8xf32>
    %1 = vector.multi_reduction <add>, %0, %cst [1] : vector<8x128xf32> to vector<8xf32>
    %2 = vector.shape_cast %1 : vector<8xf32> to vector<8x1xf32>
    %cst_1 = arith.constant 1.280000e+02 : f32
    %3 = vector.broadcast %cst_1 : f32 to vector<8x1xf32>
    %4 = arith.divf %2, %3 : vector<8x1xf32>
    %5 = vector.broadcast %4 : vector<8x1xf32> to vector<8x128xf32>
    %6 = arith.subf %0, %5 : vector<8x128xf32>
    %7 = arith.mulf %6, %6 : vector<8x128xf32>
    %cst_2 = arith.constant dense<0.000000e+00> : vector<8xf32>
    %8 = vector.multi_reduction <add>, %7, %cst_2 [1] : vector<8x128xf32> to vector<8xf32>
    %9 = vector.shape_cast %8 : vector<8xf32> to vector<8x1xf32>
    %cst_3 = arith.constant 1.280000e+02 : f32
    %10 = vector.broadcast %cst_3 : f32 to vector<8x1xf32>
    %11 = arith.divf %9, %10 : vector<8x1xf32>
    %cst_4 = arith.constant 9.99999974E-6 : f32
    %12 = vector.broadcast %cst_4 : f32 to vector<8x1xf32>
    %13 = arith.addf %11, %12 : vector<8x1xf32>
    %14 = math.rsqrt %13 : vector<8x1xf32>
    %15 = vector.broadcast %14 : vector<8x1xf32> to vector<8x128xf32>
    %16 = arith.mulf %6, %15 : vector<8x128xf32>
    %c0_5 = arith.constant 0 : index
    %c0_6 = arith.constant 0 : index
    %17 = vector.load %arg2[%c0_5, %c0_6] : memref<1x128xf32, #tpu.memory_space<vmem>>, vector<1x128xf32>
    %18 = vector.broadcast %17 : vector<1x128xf32> to vector<8x128xf32>
    %19 = arith.mulf %16, %18 : vector<8x128xf32>
    %c0_7 = arith.constant 0 : index
    %c0_8 = arith.constant 0 : index
    %20 = vector.load %arg3[%c0_7, %c0_8] : memref<1x128xf32, #tpu.memory_space<vmem>>, vector<1x128xf32>
    %21 = vector.broadcast %20 : vector<1x128xf32> to vector<8x128xf32>
    %22 = arith.addf %19, %21 : vector<8x128xf32>
    %23 = arith.mulf %22, %22 : vector<8x128xf32>
    %24 = arith.mulf %22, %23 : vector<8x128xf32>
    %cst_9 = arith.constant 4.471500e-02 : f32
    %25 = vector.broadcast %cst_9 : f32 to vector<8x128xf32>
    %26 = arith.mulf %25, %24 : vector<8x128xf32>
    %27 = arith.addf %22, %26 : vector<8x128xf32>
    %cst_10 = arith.constant 0.797884583 : f32
    %28 = vector.broadcast %cst_10 : f32 to vector<8x128xf32>
    %29 = arith.mulf %28, %27 : vector<8x128xf32>
    %30 = math.tanh %29 : vector<8x128xf32>
    %cst_11 = arith.constant 1.000000e+00 : f32
    %31 = vector.broadcast %cst_11 : f32 to vector<8x128xf32>
    %32 = arith.addf %31, %30 : vector<8x128xf32>
    %cst_12 = arith.constant 5.000000e-01 : f32
    %33 = vector.broadcast %cst_12 : f32 to vector<8x128xf32>
    %34 = arith.mulf %33, %32 : vector<8x128xf32>
    %35 = arith.mulf %22, %34 : vector<8x128xf32>
    %36 = arith.truncf %35 : vector<8x128xf32> to vector<8x128xbf16>
    %c0_13 = arith.constant 0 : index
    %c0_14 = arith.constant 0 : index
    %37 = vector.load %arg4[%c0_13, %c0_14] : memref<128x384xbf16, #tpu.memory_space<vmem>>, vector<128x384xbf16>
    %cst_15 = arith.constant dense<0.000000e+00> : vector<8x384xf32>
    %38 = tpu.matmul %36, %37, %cst_15 {dimension_numbers = #tpu.dot_dimension_numbers<[1], [0], [0], [1], [0, 0, 1, 1], [], []>} : vector<8x128xbf16>, vector<128x384xbf16>, vector<8x384xf32> -> vector<8x384xf32>
    %c0_16 = arith.constant 0 : index
    %c0_17 = arith.constant 0 : index
    %39 = vector.load %arg5[%c0_16, %c0_17] : memref<1x384xf32, #tpu.memory_space<vmem>>, vector<1x384xf32>
    %40 = vector.broadcast %39 : vector<1x384xf32> to vector<8x384xf32>
    %41 = arith.addf %38, %40 : vector<8x384xf32>
    %42 = arith.mulf %41, %41 : vector<8x384xf32>
    %cst_18 = arith.constant dense<0.000000e+00> : vector<8xf32>
    %43 = vector.multi_reduction <add>, %42, %cst_18 [1] : vector<8x384xf32> to vector<8xf32>
    %44 = vector.shape_cast %43 : vector<8xf32> to vector<8x1xf32>
    %cst_19 = arith.constant 1.000000e-24 : f32
    %45 = vector.broadcast %cst_19 : f32 to vector<8x1xf32>
    %46 = arith.maximumf %44, %45 : vector<8x1xf32>
    %47 = math.rsqrt %46 : vector<8x1xf32>
    %48 = vector.broadcast %47 : vector<8x1xf32> to vector<8x384xf32>
    %49 = arith.mulf %41, %48 : vector<8x384xf32>
    %c0_20 = arith.constant 0 : index
    %c0_21 = arith.constant 0 : index
    %50 = vector.load %arg6[%c0_20, %c0_21] : memref<8x384xf32, #tpu.memory_space<vmem>>, vector<8x384xf32>
    tpu.vector_store %arg6[%c0_20, %c0_21], %49 {strides = array<i32>} : memref<8x384xf32, #tpu.memory_space<vmem>>, vector<8x384xf32>,
    return
  }
  func.func @transform_0(%arg0: i32) -> (i32, i32) {
    %c0_i32 = arith.constant 0 : i32
    %c0_i32_0 = arith.constant 0 : i32
    return %arg0, %c0_i32 : i32, i32
  }
  func.func @transform_1(%arg0: i32) -> (i32, i32) {
    %c0_i32 = arith.constant 0 : i32
    %c0_i32_0 = arith.constant 0 : i32
    %c0_i32_1 = arith.constant 0 : i32
    return %c0_i32, %c0_i32_0 : i32, i32
  }
  func.func @transform_2(%arg0: i32) -> (i32, i32) {
    %c0_i32 = arith.constant 0 : i32
    %c0_i32_0 = arith.constant 0 : i32
    %c0_i32_1 = arith.constant 0 : i32
    return %c0_i32, %c0_i32_0 : i32, i32
  }
  func.func @transform_3(%arg0: i32) -> (i32, i32) {
    %c0_i32 = arith.constant 0 : i32
    %c0_i32_0 = arith.constant 0 : i32
    %c0_i32_1 = arith.constant 0 : i32
    return %c0_i32, %c0_i32_0 : i32, i32
  }
  func.func @transform_4(%arg0: i32) -> (i32, i32) {
    %c0_i32 = arith.constant 0 : i32
    %c0_i32_0 = arith.constant 0 : i32
    %c0_i32_1 = arith.constant 0 : i32
    return %c0_i32, %c0_i32_0 : i32, i32
  }
  func.func @transform_5(%arg0: i32) -> (i32, i32) {
    %c0_i32 = arith.constant 0 : i32
    %c0_i32_0 = arith.constant 0 : i32
    return %arg0, %c0_i32 : i32, i32
  }
}

</mosaic_0001>

<llo_original>
// kernel: student_tower_forward.1
$region0: #{student_tower_forward.1}
  #allocation0 [shape = 'u32[]', space=smem, size = 0x4, offset = 0x4, fixed_abs, tag = 'smem constant byte address 0x4 - core index']
  #allocation1 [shape = 'u32[144,128]{1,0:T(1,128)}', space=vmem, size = 0x12000, scoped, tag = 'internal scratch']
  %s0 = inlined_call_operand.vmem [shape: f32[8,128], index: 0, kind: input, shape index: {}]
  %s1 = inlined_call_operand.vmem [shape: f32[1,128], index: 1, kind: input, shape index: {}]
  %s2 = inlined_call_operand.vmem [shape: f32[1,128], index: 2, kind: input, shape index: {}]
  %s3 = inlined_call_operand.vmem [shape: bf16[128,384], index: 3, kind: input, shape index: {}]
  %s4 = inlined_call_operand.vmem [shape: f32[1,384], index: 4, kind: input, shape index: {}]
  %s5 = inlined_call_operand.hbm [shape: f32[8,384], index: 5, kind: output, shape index: {}]
  %s6 = sld [smem:[#allocation0]]
  $region30: #{student_tower_forward.1} parent=0
    _
  %s8 = ssub.s32 1, %s6
  %s9 = scalar_select 0, %s8, %s6
  $region1: #{student_tower_forward.1} parent=0
    #allocation2 [shape = 'u8[12288]{0}', space=vmem, size = 0x3000, scoped, tag = 'output window, operand 0, single buffered']
    #allocation3 [shape = 's32[1]{0}', space=sflag, size = 0x4, scoped, tag = 'scoped memory for student_tower_forward.1']
    %10 = vsyncpa [#allocation3], 0
    // Predicated region
    $region2: #{student_tower_forward.1} parent=1 // pred_check
      _
    $region3: #{student_tower_forward.1} parent=1 // pred_check_branch
      %12 = sbr.rel (0) target = $region5
    $region4: #{student_tower_forward.1} parent=1 // pred_region
      _
    $region5: #{student_tower_forward.1} parent=1 // pred_fallthru
      _
    // Predicated region
    $region6: #{student_tower_forward.1} parent=1 // pred_check
      _
    $region7: #{student_tower_forward.1} parent=1 // pred_check_branch
      %14 = sbr.rel (0) target = $region9
    $region8: #{student_tower_forward.1} parent=1 // pred_region
      _
    $region9: #{student_tower_forward.1} parent=1 // pred_fallthru
      _
    // Predicated region
    $region10: #{student_tower_forward.1} parent=1 // pred_check
      _
    $region11: #{student_tower_forward.1} parent=1 // pred_check_branch
      %16 = sbr.rel (0) target = $region13
    $region12: #{student_tower_forward.1} parent=1 // pred_region
      _
    $region13: #{student_tower_forward.1} parent=1 // pred_fallthru
      _
    // Predicated region
    $region14: #{student_tower_forward.1} parent=1 // pred_check
      _
    $region15: #{student_tower_forward.1} parent=1 // pred_check_branch
      %18 = sbr.rel (0) target = $region17
    $region16: #{student_tower_forward.1} parent=1 // pred_region
      _
    $region17: #{student_tower_forward.1} parent=1 // pred_fallthru
      _
    // Predicated region
    $region18: #{student_tower_forward.1} parent=1 // pred_check
      _
    $region19: #{student_tower_forward.1} parent=1 // pred_check_branch
      %20 = sbr.rel (0) target = $region21
    $region20: #{student_tower_forward.1} parent=1 // pred_region
      _
    $region21: #{student_tower_forward.1} parent=1 // pred_fallthru
      _
    %v22 = vld [vmem:[%s0] sm:$0xff]
    %23 = vadd.xlane.f32.xlu0 %v22
    %v24 = vpop.xlane.xlu0 %23
    %v25 = vrcp.pop 128.0
    %v26 = vmul.f32 %v24, %v25
    %v27 = vsub.f32 %v22, %v26
    %v28 = vmul.f32 %v27, %v27
    %29 = vadd.xlane.f32.xlu0 %v28
    %v30 = vpop.xlane.xlu0 %29
    %v31 = vmul.f32 %v30, %v25
    %v32 = vadd.f32 %v31, 1e-05
    %v33 = vrsqrt.pop %v32
    %v34 = vmul.f32 %v27, %v33
    %v35 = vld [vmem:[%s1] sm:$0x1]
    %v37 = vlaneseq
    %v38 = vshrl.u32 %v37, 7
    %v39 = vsub.s32 0, %v38
    %v40 = vrot.slane %v35, %v39
    %v42 = vmul.f32 %v34, %v40
    %v43 = vld [vmem:[%s2] sm:$0x1]
    %v45 = vlaneseq
    %v46 = vshrl.u32 %v45, 7
    %v47 = vsub.s32 0, %v46
    %v48 = vrot.slane %v43, %v47
    %v50 = vadd.f32 %v42, %v48
    %v51 = vmul.f32 %v50, %v50
    %v52 = vmul.f32 %v50, %v51
    %v53 = vmul.f32 %v52, 0.044715
    %v54 = vadd.f32 %v50, %v53
    %v55 = vmul.f32 %v54, 0.7978846
    %v56 = vtanh.pop %v55
    %v57 = vadd.f32 %v56, 1.0
    %v58 = vmul.f32 %v57, 0.5
    %v59 = vmul.f32 %v50, %v58
    %v60 = vpack.c.bf16 %v59, %v59
    %v61 = vld [vmem:[%s3] sm:$0xff]
    %v62 = vld [vmem:[%s3 + $0x8] sm:$0xf]
    %v63 = vld [vmem:[%s3 + $0xc] sm:$0xff]
    %v64 = vld [vmem:[%s3 + $0x14] sm:$0xf]
    %v65 = vld [vmem:[%s3 + $0x18] sm:$0xff]
    %v66 = vld [vmem:[%s3 + $0x20] sm:$0xf]
    %v67 = vld [vmem:[%s3 + $0x24] sm:$0xff]
    %v68 = vld [vmem:[%s3 + $0x2c] sm:$0xf]
    %v69 = vld [vmem:[%s3 + $0x30] sm:$0xff]
    %v70 = vld [vmem:[%s3 + $0x38] sm:$0xf]
    %v71 = vld [vmem:[%s3 + $0x3c] sm:$0xff]
    %v72 = vld [vmem:[%s3 + $0x44] sm:$0xf]
    %v73 = vld [vmem:[%s3 + $0x48] sm:$0xff]
    %v74 = vld [vmem:[%s3 + $0x50] sm:$0xf]
    %v75 = vld [vmem:[%s3 + $0x54] sm:$0xff]
    %v76 = vld [vmem:[%s3 + $0x5c] sm:$0xf]
    %v77 = vld [vmem:[%s3 + $0x60] sm:$0xff]
    %v78 = vld [vmem:[%s3 + $0x68] sm:$0xf]
    %v79 = vld [vmem:[%s3 + $0x6c] sm:$0xff]
    %v80 = vld [vmem:[%s3 + $0x74] sm:$0xf]
    %v81 = vld [vmem:[%s3 + $0x78] sm:$0xff]
    %v82 = vld [vmem:[%s3 + $0x80] sm:$0xf]
    %v83 = vld [vmem:[%s3 + $0x84] sm:$0xff]
    %v84 = vld [vmem:[%s3 + $0x8c] sm:$0xf]
    %v85 = vld [vmem:[%s3 + $0x90] sm:$0xff]
    %v86 = vld [vmem:[%s3 + $0x98] sm:$0xf]
    %v87 = vld [vmem:[%s3 + $0x9c] sm:$0xff]
    %v88 = vld [vmem:[%s3 + $0xa4] sm:$0xf]
    %v89 = vld [vmem:[%s3 + $0xa8] sm:$0xff]
    %v90 = vld [vmem:[%s3 + $0xb0] sm:$0xf]
    %v91 = vld [vmem:[%s3 + $0xb4] sm:$0xff]
    %v92 = vld [vmem:[%s3 + $0xbc] sm:$0xf]
    %v93 = vld [vmem:[%s4] sm:$0x7]
    %v95 = vlaneseq
    %v96 = vshrl.u32 %v95, 7
    %v97 = vsub.s32 0, %v96
    %v98 = vrot.slane %v93, %v97
    %v99 = vlaneseq
    %v100 = vshrl.u32 %v99, 7
    %v101 = vsub.s32 1, %v100
    %v102 = vrot.slane %v93, %v101
    %v103 = vlaneseq
    %v104 = vshrl.u32 %v103, 7
    %v105 = vsub.s32 2, %v104
    %v106 = vrot.slane %v93, %v105
    %v142 = vunpack.c.l.b16 %v61
    %v143 = vunpack.c.h.b16 %v61
    %v144 = vunpack.c.l.b16 %v62
    %v145 = vunpack.c.l.b16 %v63
    %v146 = vunpack.c.h.b16 %v63
    %v147 = vunpack.c.l.b16 %v64
    %v148 = vunpack.c.l.b16 %v65
    %v149 = vunpack.c.h.b16 %v65
    %v150 = vunpack.c.l.b16 %v66
    %v151 = vunpack.c.l.b16 %v67
    %v152 = vunpack.c.h.b16 %v67
    %v153 = vunpack.c.l.b16 %v68
    %v154 = vunpack.c.l.b16 %v69
    %v155 = vunpack.c.h.b16 %v69
    %v156 = vunpack.c.l.b16 %v70
    %v157 = vunpack.c.l.b16 %v71
    %v158 = vunpack.c.h.b16 %v71
    %v159 = vunpack.c.l.b16 %v72
    %v160 = vunpack.c.l.b16 %v73
    %v161 = vunpack.c.h.b16 %v73
    %v162 = vunpack.c.l.b16 %v74
    %v163 = vunpack.c.l.b16 %v75
    %v164 = vunpack.c.h.b16 %v75
    %v165 = vunpack.c.l.b16 %v76
    %v166 = vunpack.c.l.b16 %v77
    %v167 = vunpack.c.h.b16 %v77
    %v168 = vunpack.c.l.b16 %v78
    %v169 = vunpack.c.l.b16 %v79
    %v170 = vunpack.c.h.b16 %v79
    %v171 = vunpack.c.l.b16 %v80
    %v172 = vunpack.c.l.b16 %v81
    %v173 = vunpack.c.h.b16 %v81
    %v174 = vunpack.c.l.b16 %v82
    %v175 = vunpack.c.l.b16 %v83
    %v176 = vunpack.c.h.b16 %v83
    %v177 = vunpack.c.l.b16 %v84
    %v178 = vunpack.c.l.b16 %v85
    %v179 = vunpack.c.h.b16 %v85
    %v180 = vunpack.c.l.b16 %v86
    %v181 = vunpack.c.l.b16 %v87
    %v182 = vunpack.c.h.b16 %v87
    %v183 = vunpack.c.l.b16 %v88
    %v184 = vunpack.c.l.b16 %v89
    %v185 = vunpack.c.h.b16 %v89
    %v186 = vunpack.c.l.b16 %v90
    %v187 = vunpack.c.l.b16 %v91
    %v188 = vunpack.c.h.b16 %v91
    %v189 = vunpack.c.l.b16 %v92
    %v190 = vpack.c.b16 %v145, %v142
    %v191 = vpack.c.b16 %v146, %v143
    %v192 = vpack.c.b16 %v147, %v144
    %v193 = vpack.c.b16 %v151, %v148
    %v194 = vpack.c.b16 %v152, %v149
    %v195 = vpack.c.b16 %v153, %v150
    %v196 = vpack.c.b16 %v157, %v154
    %v197 = vpack.c.b16 %v158, %v155
    %v198 = vpack.c.b16 %v159, %v156
    %v199 = vpack.c.b16 %v163, %v160
    %v200 = vpack.c.b16 %v164, %v161
    %v201 = vpack.c.b16 %v165, %v162
    %v202 = vpack.c.b16 %v169, %v166
    %v203 = vpack.c.b16 %v170, %v167
    %v204 = vpack.c.b16 %v171, %v168
    %v205 = vpack.c.b16 %v175, %v172
    %v206 = vpack.c.b16 %v176, %v173
    %v207 = vpack.c.b16 %v177, %v174
    %v208 = vpack.c.b16 %v181, %v178
    %v209 = vpack.c.b16 %v182, %v179
    %v210 = vpack.c.b16 %v183, %v180
    %v211 = vpack.c.b16 %v187, %v184
    %v212 = vpack.c.b16 %v188, %v185
    %v213 = vpack.c.b16 %v189, %v186
    %238 = vmatprep.subr.bf16.mxu0 %v191
    %239 = vmatpush1.bf16.msra.mxu0 %v190
    %240 = vmatprep.subr.bf16.mxu0 %v194
    %241 = vmatpush1.bf16.msra.mxu0 %v193
    %242 = vmatprep.subr.bf16.mxu0 %v197
    %243 = vmatpush1.bf16.msra.mxu0 %v196
    %244 = vmatprep.subr.bf16.mxu0 %v200
    %245 = vmatpush1.bf16.msra.mxu0 %v199
    %246 = vmatprep.subr.bf16.mxu0 %v203
    %247 = vmatpush1.bf16.msra.mxu0 %v202
    %248 = vmatprep.subr.bf16.mxu0 %v206
    %249 = vmatpush1.bf16.msra.mxu0 %v205
    %250 = vmatprep.subr.bf16.mxu0 %v209
    %251 = vmatpush1.bf16.msra.mxu0 %v208
    %252 = vmatprep.subr.bf16.mxu0 %v212
    %253 = vmatpush1.bf16.msra.mxu0 %v211
    %254 = vmatprep.subr.bf16.mxu0 0
    %255 = vmatpush1.bf16.msra.mxu0 0
    %256 = vmatprep.subr.bf16.mxu0 0
    %257 = vmatpush1.bf16.msra.mxu0 0
    %258 = vmatprep.subr.bf16.mxu0 0
    %259 = vmatpush1.bf16.msra.mxu0 0
    %260 = vmatprep.subr.bf16.mxu0 0
    %261 = vmatpush1.bf16.msra.mxu0 0
    %262 = vmatprep.subr.bf16.mxu0 0
    %263 = vmatpush1.bf16.msra.mxu0 0
    %264 = vmatprep.subr.bf16.mxu0 0
    %265 = vmatpush1.bf16.msra.mxu0 0
    %266 = vmatprep.subr.bf16.mxu0 0
    %267 = vmatpush1.bf16.msra.mxu0 0
    %268 = vmatprep.subr.bf16.mxu0 0
    %269 = vmatpush1.bf16.msra.mxu0 0
    %270 = vmatprep.mubr.bf16.mxu0 0
    %271 = vmatmul.mubr.bf16.gmra.mrb[0].mxu0 %v60
    %v272 = vpop.f32.mrb[0].mxu0
    %v273 = vadd.f32 %v98, %v272
    %v274 = vpop.f32.mrb[0].mxu0
    %v275 = vadd.f32 %v102, %v274
    %v276 = vpop.f32.mrb[0].mxu0
    %v277 = vpop.f32.mrb[0].mxu0
    %278 = vdwg.mxu0
    %279 = vmatprep.subr.bf16.mxu0 0
    %280 = vmatpush1.bf16.msra.mxu0 %v192
    %281 = vmatprep.subr.bf16.mxu0 0
    %282 = vmatpush1.bf16.msra.mxu0 %v195
    %283 = vmatprep.subr.bf16.mxu0 0
    %284 = vmatpush1.bf16.msra.mxu0 %v198
    %285 = vmatprep.subr.bf16.mxu0 0
    %286 = vmatpush1.bf16.msra.mxu0 %v201
    %287 = vmatprep.subr.bf16.mxu0 0
    %288 = vmatpush1.bf16.msra.mxu0 %v204
    %289 = vmatprep.subr.bf16.mxu0 0
    %290 = vmatpush1.bf16.msra.mxu0 %v207
    %291 = vmatprep.subr.bf16.mxu0 0
    %292 = vmatpush1.bf16.msra.mxu0 %v210
    %293 = vmatprep.subr.bf16.mxu0 0
    %294 = vmatpush1.bf16.msra.mxu0 %v213
    %295 = vmatprep.subr.bf16.mxu0 0
    %296 = vmatpush1.bf16.msra.mxu0 0
    %297 = vmatprep.subr.bf16.mxu0 0
    %298 = vmatpush1.bf16.msra.mxu0 0
    %299 = vmatprep.subr.bf16.mxu0 0
    %300 = vmatpush1.bf16.msra.mxu0 0
    %301 = vmatprep.subr.bf16.mxu0 0
    %302 = vmatpush1.bf16.msra.mxu0 0
    %303 = vmatprep.subr.bf16.mxu0 0
    %304 = vmatpush1.bf16.msra.mxu0 0
    %305 = vmatprep.subr.bf16.mxu0 0
    %306 = vmatpush1.bf16.msra.mxu0 0
    %307 = vmatprep.subr.bf16.mxu0 0
    %308 = vmatpush1.bf16.msra.mxu0 0
    %309 = vmatprep.subr.bf16.mxu0 0
    %310 = vmatpush1.bf16.msra.mxu0 0
    %311 = vmatprep.mubr.bf16.mxu0 0
    %312 = vmatmul.mubr.bf16.gmra.mrb[0].mxu0 %v60
    %v313 = vpop.f32.mrb[0].mxu0
    %v314 = vadd.f32 %v106, %v313
    %v315 = vpop.f32.mrb[0].mxu0
    %v316 = vpop.f32.mrb[0].mxu0
    %v317 = vpop.f32.mrb[0].mxu0
    %318 = vdwg.mxu0
    %v319 = vmul.f32 %v273, %v273
    %v320 = vmul.f32 %v275, %v275
    %v321 = vmul.f32 %v314, %v314
    %v322 = vadd.f32 %v319, %v320
    %v323 = vadd.f32 %v322, %v321
    %324 = vadd.xlane.f32.xlu0 %v323
    %v325 = vpop.xlane.xlu0 %324
    %v326 = vmax.f32 %v325, 1e-24
    %v327 = vrsqrt.pop %v326
    %v328 = vmul.f32 %v273, %v327
    %v329 = vmul.f32 %v275, %v327
    %v330 = vmul.f32 %v314, %v327
    %331 = vst [vmem:[#allocation2] sm:$0xff] %v328
    %332 = vst [vmem:[#allocation2 + $0x8] sm:$0xff] %v329
    %333 = vst [vmem:[#allocation2 + $0x10] sm:$0xff] %v330
    // Predicated region
    $region22: #{student_tower_forward.1} parent=1 // pred_check
      _
    $region23: #{student_tower_forward.1} parent=1 // pred_check_branch
      %335 = sbr.rel (0) target = $region25
    $region24: #{student_tower_forward.1} parent=1 // pred_region
      %s337 = ssub.s32 384, 384
      %338 = vsyncadd [#allocation3], %s337
      %s340 = sshll.u32 [#allocation2], 4
      %s341 = int_to_ptr.vmem [resolvable:$true] %s340
      %343 = dma.vmem_to_hbm [thread:$0]  %s341, 384, %s5, [#allocation3]
    $region25: #{student_tower_forward.1} parent=1 // pred_fallthru
      _
    // Predicated region
    $region26: #{student_tower_forward.1} parent=1 // pred_check
      _
    $region27: #{student_tower_forward.1} parent=1 // pred_check_branch
      %345 = sbr.rel (0) target = $region29
    $region28: #{student_tower_forward.1} parent=1 // pred_region
      %346 = dma.done [#allocation3], 384
    $region29: #{student_tower_forward.1} parent=1 // pred_fallthru
      _
    %347 = vsyncpa [#allocation3], 1

</llo_original>
